<compile_context>
chip_gen: v7x
topology: tpu7x:2x2x1
jax: 0.10.0
libtpu: 0.0.40
codegen_flags: <defaults>
</compile_context>

<pallas_src>
import math

import jax
import jax.numpy as jnp
import numpy as np
from jax.experimental import pallas as pl
from jax.experimental.pallas import tpu as pltpu

# ---------------- small, deterministic config ----------------
B = 2            # batch
T = 8            # sequence length
DFRGB = 32       # rgb feature dim  (dfeat[0])
DFAUD = 16       # audio feature dim (dfeat[1])
XAT = 32         # _cfg.xat_hdim
FFN = DFRGB      # CMA_LA ffn_hdim = dfrgb (Network passes ffn_hdim=self.dfrgb)
SIGMA = 0.6      # _cfg.sigma  -> DistanceAdj2.w
BIAS = 0.2       # _cfg.bias   -> DistanceAdj2.b
LN_EPS = 1e-5
KS = 7           # SConv kernel size
KS_PAD = 8       # KS padded to 8 lanes
PAD = 8          # sublane-aligned zero pad above/below y in the band scratch
BT = B * T
XIN_D = DFRGB + 3 * DFAUD   # 80 (rgb + im2col audio taps)

SLAB_ROWS = 112
SLAB_COLS = 128

# 2-D dense slab packing: (row0, col0, rows, cols) inside the (112, 128) slab.
SLAB_LAYOUT = {
    'wq':     (0,    0, XAT,       XAT),
    'wkv':    (0,   32, DFRGB,     2 * XAT),   # fused K|V projection
    'w2st':   (0,   96, FFN,       KS_PAD),    # folded (w2 @ ws), KS->8 lanes
    'adjbig': (0,  112, BT,        BT),        # block-diag adj + (-1e9) mask
    'pmask':  (16, 112, BT,        KS_PAD),    # band validity mask on y[r',k]
    'bias_r': (16, 120, BT,        1),         # folded per-row head bias
    'wo':     (32,   0, XAT,       DFRGB),
    'w1':     (32,  32, DFRGB,     FFN),
    'b_emb':  (32,  64, 1,         XAT),
    'bq':     (33,  64, 1,         XAT),
    'bo':     (34,  64, 1,         DFRGB),
    'gamma':  (35,  64, 1,         DFRGB),
    'beta':   (36,  64, 1,         DFRGB),
    'b1':     (37,  64, 1,         FFN),
    'bkv':    (38,  64, 1,         2 * XAT),
    'w_emb':  (64,   0, 3 * DFAUD, XAT),       # im2col temporal-conv weight
}


def _gelu_exact(x):
    # matches nn.GELU() default (erf-based)
    return 0.5 * x * (1.0 + jax.lax.erf(x / jnp.float32(math.sqrt(2.0))))


# ---------------- the fused forward kernel (single invocation) ----------------
def network_kernel(x_ref, slab_ref, out_ref, ypad_ref):
    f32 = jnp.float32

    def W(name):
        r0, c0, rows, cols = SLAB_LAYOUT[name]
        return slab_ref[r0:r0 + rows, c0:c0 + cols]

    xin = x_ref[...]                               # (BT, 80)
    frgb = xin[:, :DFRGB]                          # (BT, 32)
    aud3 = xin[:, DFRGB:XIN_D]                     # (BT, 48) im2col taps

    # --- Temporal: Conv1d(DFAUD->XAT, k=3, pad=1) as one im2col matmul + ReLU
    emb = jnp.dot(aud3, W('w_emb'), preferred_element_type=f32) + W('b_emb')
    faud = jnp.maximum(emb, 0.0)                   # (BT, XAT)

    # --- CrossAttention projections (q from audio emb; fused k|v from rgb)
    q = jnp.dot(faud, W('wq'), preferred_element_type=f32) + W('bq')
    kv = jnp.dot(frgb, W('wkv'), preferred_element_type=f32) + W('bkv')
    k = kv[:, :XAT]
    v = kv[:, XAT:2 * XAT]

    # --- block-diagonal attention over the flat (B*T) axis: one NT matmul;
    #     DistanceAdj2 bias + -1e9 cross-batch mask are baked into `adjbig`.
    logits = jax.lax.dot_general(q, k, (((1,), (1,)), ((), ())),
                                 preferred_element_type=f32)      # (BT, BT)
    logits = logits * f32(1.0 / math.sqrt(XAT)) + W('adjbig')
    logits = logits - jnp.max(logits, axis=-1, keepdims=True)
    e = jnp.exp(logits)
    att = e * pl.reciprocal(jnp.sum(e, axis=-1, keepdims=True), approx=True)
    temp = jnp.dot(att, v, preferred_element_type=f32)            # (BT, XAT)

    xatt = jnp.dot(temp, W('wo'), preferred_element_type=f32) + W('bo')

    # --- residual + LayerNorm(DFRGB)
    new_x = frgb + xatt
    mu = jnp.mean(new_x, axis=-1, keepdims=True)
    var = jnp.mean((new_x - mu) ** 2, axis=-1, keepdims=True)
    new_x = (new_x - mu) * jax.lax.rsqrt(var + LN_EPS)
    new_x = new_x * W('gamma') + W('beta')

    # --- FFN first 1x1 conv + GELU (dropout = identity)
    h = jnp.dot(new_x, W('w1'), preferred_element_type=f32) + W('b1')
    h = _gelu_exact(h)                                            # (BT, FFN)

    # --- score head: one tap matmul (w2 folded into the k=7 conv host-side),
    #     masked, then a banded shift-add through a zero-padded VMEM scratch.
    y = jnp.dot(h, W('w2st'), preferred_element_type=f32) * W('pmask')  # (BT, 8)
    ypad_ref[0:PAD, :] = jnp.zeros((PAD, KS_PAD), f32)
    ypad_ref[PAD + BT:2 * PAD + BT, :] = jnp.zeros((PAD, KS_PAD), f32)
    ypad_ref[PAD:PAD + BT, :] = y
    base = PAD - KS // 2                                          # = 5
    acc = ypad_ref[base:base + BT, 0:1]
    for kk in range(1, KS):                                       # static unroll
        acc = acc + ypad_ref[base + kk:base + kk + BT, kk:kk + 1]
    out_ref[...] = jax.nn.sigmoid(acc + W('bias_r'))              # (BT, 1)


# ---------------- wrapper ----------------
@jax.jit
def network_forward(x, slab):
    # wrapper-side layout plumbing: gather the 3 temporal-conv taps (im2col)
    frgb = x[:, :, :DFRGB]
    faud = x[:, :, DFRGB:]
    zrow = jnp.zeros((B, 1, DFAUD), jnp.float32)
    a_prev = jnp.concatenate([zrow, faud[:, :-1]], axis=1)
    a_next = jnp.concatenate([faud[:, 1:], zrow], axis=1)
    xin = jnp.concatenate([frgb, a_prev, faud, a_next],
                          axis=-1).reshape(BT, XIN_D)             # (16, 80)

    out = pl.pallas_call(
        network_kernel,
        out_shape=jax.ShapeDtypeStruct((BT, 1), jnp.float32),
        in_specs=[pl.BlockSpec((BT, XIN_D), lambda: (0, 0)),
                  pl.BlockSpec((SLAB_ROWS, SLAB_COLS), lambda: (0, 0))],
        out_specs=pl.BlockSpec((BT, 1), lambda: (0, 0)),
        scratch_shapes=[pltpu.VMEM((2 * PAD + BT, KS_PAD), jnp.float32)],
    )(xin, slab)
    return out.reshape(B, T)


# ---------------- deterministic parameter init (PyTorch-equivalent layouts) ----------------
def init_params(key):
    ks = jax.random.split(key, 16)

    def unif(k, shape, fan_in):
        bnd = 1.0 / math.sqrt(fan_in)
        return jax.random.uniform(k, shape, jnp.float32, -bnd, bnd)

    # PyTorch-layout weights
    w_emb_t = unif(ks[0], (XAT, DFAUD, 3), DFAUD * 3)   # Conv1d(DFAUD, XAT, 3)
    b_emb = unif(ks[1], (XAT,), DFAUD * 3)
    wq = unif(ks[2], (XAT, XAT), XAT);     bq = unif(ks[3], (XAT,), XAT)
    wk = unif(ks[4], (XAT, DFRGB), DFRGB); bk = unif(ks[5], (XAT,), DFRGB)
    wv = unif(ks[6], (XAT, DFRGB), DFRGB); bv = unif(ks[7], (XAT,), DFRGB)
    wo = unif(ks[8], (DFRGB, XAT), XAT);   bo = unif(ks[9], (DFRGB,), XAT)
    gamma = jnp.ones((DFRGB,), jnp.float32)
    beta = jnp.zeros((DFRGB,), jnp.float32)
    w1 = unif(ks[10], (FFN, DFRGB, 1), DFRGB); b1 = unif(ks[11], (FFN,), DFRGB)
    w2 = unif(ks[12], (XAT, FFN, 1), FFN);     b2 = unif(ks[13], (XAT,), FFN)
    ws = unif(ks[14], (1, XAT, KS), XAT * KS); bs = unif(ks[15], (1,), XAT * KS)

    # kernel-friendly layouts (x @ W; biases as (1, D) rows)
    return {
        'w_emb': jnp.transpose(w_emb_t, (2, 1, 0)),  # (3, DFAUD, XAT)
        'b_emb': b_emb.reshape(1, XAT),
        'wq': wq.T, 'bq': bq.reshape(1, XAT),
        'wk': wk.T, 'bk': bk.reshape(1, XAT),
        'wv': wv.T, 'bv': bv.reshape(1, XAT),
        'wo': wo.T, 'bo': bo.reshape(1, DFRGB),
        'gamma': gamma.reshape(1, DFRGB), 'beta': beta.reshape(1, DFRGB),
        'w1': w1[:, :, 0].T, 'b1': b1.reshape(1, FFN),
        'w2': w2[:, :, 0].T, 'b2': b2.reshape(1, XAT),
        'ws': ws[0], 'bs': bs.reshape(1, 1),
    }


# ---------------- host-side slab packing (fusions/folds applied here) ----------------
def pack_slab(p):
    slab = np.zeros((SLAB_ROWS, SLAB_COLS), np.float32)

    def put(name, val):
        r0, c0, rows, cols = SLAB_LAYOUT[name]
        slab[r0:r0 + rows, c0:c0 + cols] = \
            np.asarray(val, np.float32).reshape(rows, cols)

    # im2col temporal-conv weight: taps stacked [prev; center; next]
    put('w_emb', np.asarray(p['w_emb']).reshape(3 * DFAUD, XAT))
    put('b_emb', p['b_emb'])
    put('wq', p['wq']); put('bq', p['bq'])
    # fused k|v projection
    put('wkv', np.concatenate([np.asarray(p['wk']), np.asarray(p['wv'])], axis=1))
    put('bkv', np.concatenate([np.asarray(p['bk']), np.asarray(p['bv'])], axis=1))
    put('wo', p['wo']); put('bo', p['bo'])
    put('gamma', p['gamma']); put('beta', p['beta'])
    put('w1', p['w1']); put('b1', p['b1'])

    # fold FFN second projection into the k=7 score-conv weights; pad KS->8
    w2s = np.asarray(p['w2']) @ np.asarray(p['ws'])        # (FFN, KS)
    w2st = np.zeros((FFN, KS_PAD), np.float32)
    w2st[:, :KS] = w2s
    put('w2st', w2st)

    # band validity mask applied to y[r', k] (kills cross-batch contributions)
    pmask = np.zeros((BT, KS_PAD), np.float32)
    for rp in range(BT):
        for k in range(KS):
            r = rp - k + KS // 2            # output row this element feeds
            if 0 <= r < BT and (r // T) == (rp // T):
                pmask[rp, k] = 1.0
    put('pmask', pmask)

    # folded per-row head bias: bs + sum over in-bounds taps of (b2 . ws[:, k])
    b2ws = (np.asarray(p['b2']) @ np.asarray(p['ws'])).reshape(KS)
    tt = np.arange(T)[:, None]
    kk = np.arange(KS)[None, :]
    valid = ((tt + kk - KS // 2 >= 0) & (tt + kk - KS // 2 <= T - 1)).astype(np.float32)
    bias_t = np.asarray(p['bs'])[0, 0] + valid @ b2ws      # (T,)
    put('bias_r', np.tile(bias_t, B).reshape(BT, 1))

    # block-diagonal DistanceAdj2 bias + -1e9 cross-batch mask
    idx = np.arange(T, dtype=np.float32)
    dist = np.abs(idx[:, None] - idx[None, :])
    adj = np.exp(-np.abs(SIGMA * dist * dist - BIAS))
    adjbig = np.full((BT, BT), -1e9, np.float32)
    for b in range(B):
        adjbig[b * T:(b + 1) * T, b * T:(b + 1) * T] = adj
    put('adjbig', adjbig)
    return jnp.asarray(slab)


# ---------------- pure-JAX reference (for correctness check) ----------------
def reference_forward(x, p):
    hp = jax.lax.Precision.HIGHEST
    frgb = x[:, :, :DFRGB]
    faud_in = x[:, :, DFRGB:]
    zrow = jnp.zeros((B, 1, DFAUD), jnp.float32)
    xp = jnp.concatenate([zrow, faud_in[:, :-1]], axis=1)
    xn = jnp.concatenate([faud_in[:, 1:], zrow], axis=1)
    emb = (jnp.einsum('btd,dh->bth', xp, p['w_emb'][0], precision=hp)
           + jnp.einsum('btd,dh->bth', faud_in, p['w_emb'][1], precision=hp)
           + jnp.einsum('btd,dh->bth', xn, p['w_emb'][2], precision=hp)
           + p['b_emb'])
    faud = jnp.maximum(emb, 0.0)
    idx = jnp.arange(T, dtype=jnp.float32)
    dist = jnp.abs(idx[:, None] - idx[None, :])
    adj = jnp.exp(-jnp.abs(SIGMA * dist * dist - BIAS))
    q = jnp.einsum('bth,hk->btk', faud, p['wq'], precision=hp) + p['bq']
    k = jnp.einsum('btd,dk->btk', frgb, p['wk'], precision=hp) + p['bk']
    v = jnp.einsum('btd,dk->btk', frgb, p['wv'], precision=hp) + p['bv']
    logits = jnp.einsum('bqk,bpk->bqp', q, k, precision=hp) / math.sqrt(XAT) + adj
    att = jax.nn.softmax(logits, axis=-1)
    temp = jnp.einsum('bqp,bpk->bqk', att, v, precision=hp)
    xatt = jnp.einsum('btk,kd->btd', temp, p['wo'], precision=hp) + p['bo']
    new_x = frgb + xatt
    mu = new_x.mean(-1, keepdims=True)
    var = ((new_x - mu) ** 2).mean(-1, keepdims=True)
    new_x = (new_x - mu) / jnp.sqrt(var + LN_EPS) * p['gamma'] + p['beta']
    h = jnp.einsum('btd,df->btf', new_x, p['w1'], precision=hp) + p['b1']
    h = 0.5 * h * (1.0 + jax.lax.erf(h / jnp.float32(math.sqrt(2.0))))
    new_v = jnp.einsum('btf,fk->btk', h, p['w2'], precision=hp) + p['b2']
    zpad = jnp.zeros((B, KS // 2, XAT), jnp.float32)
    padded = jnp.concatenate([zpad, new_v, zpad], axis=1)
    acc = jnp.zeros((B, T, 1), jnp.float32)
    for kk in range(KS):
        acc = acc + jnp.einsum('btk,ko->bto', padded[:, kk:kk + T],
                               p['ws'][:, kk:kk + 1], precision=hp)
    return jax.nn.sigmoid(acc + p['bs'][0, 0])[..., 0]


if __name__ == "__main__":
    key = jax.random.PRNGKey(0)
    kx, kp = jax.random.split(key)
    x = jax.random.normal(kx, (B, T, DFRGB + DFAUD), jnp.float32)
    params = init_params(kp)
    slab = pack_slab(params)

    scores = network_forward(x, slab)
    scores = jax.block_until_ready(scores)

    ref = reference_forward(x, params)
    np.testing.assert_allclose(np.asarray(scores), np.asarray(ref),
                               rtol=2e-3, atol=2e-3)
    assert scores.shape == (B, T)
    print("KERNEL_OK")
</pallas_src>

<mosaic_0001>
module attributes {stable_mosaic.version = 11 : i64} {
  func.func @network_kernel(%arg0: memref<16x80xf32, #tpu.memory_space<vmem>>, %arg1: memref<112x128xf32, #tpu.memory_space<vmem>>, %arg2: memref<16x1xf32, #tpu.memory_space<vmem>>, %arg3: memref<32x8xf32, #tpu.memory_space<vmem>>) attributes {dimension_semantics = [], scalar_prefetch = 0 : i64, scratch_operands = 1 : i64, tpu.core_type = #tpu.core_type<tc>} {
    %c0 = arith.constant 0 : index
    %c0_0 = arith.constant 0 : index
    %0 = vector.load %arg0[%c0, %c0_0] : memref<16x80xf32, #tpu.memory_space<vmem>>, vector<16x80xf32>
    %1 = vector.extract_strided_slice %0 {offsets = [0, 0], sizes = [16, 32], strides = [1, 1]} : vector<16x80xf32> to vector<16x32xf32>
    %2 = vector.extract_strided_slice %0 {offsets = [0, 32], sizes = [16, 48], strides = [1, 1]} : vector<16x80xf32> to vector<16x48xf32>
    %c64 = arith.constant 64 : index
    %c0_1 = arith.constant 0 : index
    %3 = vector.load %arg1[%c64, %c0_1] : memref<112x128xf32, #tpu.memory_space<vmem>>, vector<48x32xf32>
    %cst = arith.constant dense<0.000000e+00> : vector<16x32xf32>
    %4 = tpu.matmul %2, %3, %cst {dimension_numbers = #tpu.dot_dimension_numbers<[1], [0], [0], [1], [0, 0, 1, 1], [], []>} : vector<16x48xf32>, vector<48x32xf32>, vector<16x32xf32> -> vector<16x32xf32>
    %c32 = arith.constant 32 : index
    %c64_2 = arith.constant 64 : index
    %5 = vector.load %arg1[%c32, %c64_2] : memref<112x128xf32, #tpu.memory_space<vmem>>, vector<1x32xf32>
    %6 = vector.broadcast %5 : vector<1x32xf32> to vector<16x32xf32>
    %7 = arith.addf %4, %6 : vector<16x32xf32>
    %cst_3 = arith.constant 0.000000e+00 : f32
    %8 = vector.broadcast %cst_3 : f32 to vector<16x32xf32>
    %9 = arith.maximumf %7, %8 : vector<16x32xf32>
    %c0_4 = arith.constant 0 : index
    %c0_5 = arith.constant 0 : index
    %10 = vector.load %arg1[%c0_4, %c0_5] : memref<112x128xf32, #tpu.memory_space<vmem>>, vector<32x32xf32>
    %cst_6 = arith.constant dense<0.000000e+00> : vector<16x32xf32>
    %11 = tpu.matmul %9, %10, %cst_6 {dimension_numbers = #tpu.dot_dimension_numbers<[1], [0], [0], [1], [0, 0, 1, 1], [], []>} : vector<16x32xf32>, vector<32x32xf32>, vector<16x32xf32> -> vector<16x32xf32>
    %c33 = arith.constant 33 : index
    %c64_7 = arith.constant 64 : index
    %12 = vector.load %arg1[%c33, %c64_7] : memref<112x128xf32, #tpu.memory_space<vmem>>, vector<1x32xf32>
    %13 = vector.broadcast %12 : vector<1x32xf32> to vector<16x32xf32>
    %14 = arith.addf %11, %13 : vector<16x32xf32>
    %c0_8 = arith.constant 0 : index
    %c32_9 = arith.constant 32 : index
    %15 = vector.load %arg1[%c0_8, %c32_9] : memref<112x128xf32, #tpu.memory_space<vmem>>, vector<32x64xf32>
    %cst_10 = arith.constant dense<0.000000e+00> : vector<16x64xf32>
    %16 = tpu.matmul %1, %15, %cst_10 {dimension_numbers = #tpu.dot_dimension_numbers<[1], [0], [0], [1], [0, 0, 1, 1], [], []>} : vector<16x32xf32>, vector<32x64xf32>, vector<16x64xf32> -> vector<16x64xf32>
    %c38 = arith.constant 38 : index
    %c64_11 = arith.constant 64 : index
    %17 = vector.load %arg1[%c38, %c64_11] : memref<112x128xf32, #tpu.memory_space<vmem>>, vector<1x64xf32>
    %18 = vector.broadcast %17 : vector<1x64xf32> to vector<16x64xf32>
    %19 = arith.addf %16, %18 : vector<16x64xf32>
    %20 = vector.extract_strided_slice %19 {offsets = [0, 0], sizes = [16, 32], strides = [1, 1]} : vector<16x64xf32> to vector<16x32xf32>
    %21 = vector.extract_strided_slice %19 {offsets = [0, 32], sizes = [16, 32], strides = [1, 1]} : vector<16x64xf32> to vector<16x32xf32>
    %cst_12 = arith.constant dense<0.000000e+00> : vector<16x16xf32>
    %22 = tpu.matmul %14, %20, %cst_12 {dimension_numbers = #tpu.dot_dimension_numbers<[1], [1], [0], [0], [0, 0, 1, 0], [], []>} : vector<16x32xf32>, vector<16x32xf32>, vector<16x16xf32> -> vector<16x16xf32>
    %cst_13 = arith.constant 0.176776692 : f32
    %23 = vector.broadcast %cst_13 : f32 to vector<16x16xf32>
    %24 = arith.mulf %22, %23 : vector<16x16xf32>
    %c0_14 = arith.constant 0 : index
    %c112 = arith.constant 112 : index
    %25 = vector.load %arg1[%c0_14, %c112] : memref<112x128xf32, #tpu.memory_space<vmem>>, vector<16x16xf32>
    %26 = arith.addf %24, %25 : vector<16x16xf32>
    %cst_15 = arith.constant dense<0xFF800000> : vector<16xf32>
    %27 = vector.multi_reduction <maximumf>, %26, %cst_15 [1] : vector<16x16xf32> to vector<16xf32>
    %28 = vector.shape_cast %27 : vector<16xf32> to vector<16x1xf32>
    %29 = vector.broadcast %28 : vector<16x1xf32> to vector<16x16xf32>
    %30 = arith.subf %26, %29 : vector<16x16xf32>
    %31 = math.exp %30 : vector<16x16xf32>
    %cst_16 = arith.constant dense<0.000000e+00> : vector<16xf32>
    %32 = vector.multi_reduction <add>, %31, %cst_16 [1] : vector<16x16xf32> to vector<16xf32>
    %33 = vector.shape_cast %32 : vector<16xf32> to vector<16x1xf32>
    %34 = tpu.reciprocal %33 {approx = true} : vector<16x1xf32> -> vector<16x1xf32>
    %35 = vector.broadcast %34 : vector<16x1xf32> to vector<16x16xf32>
    %36 = arith.mulf %31, %35 : vector<16x16xf32>
    %cst_17 = arith.constant dense<0.000000e+00> : vector<16x32xf32>
    %37 = tpu.matmul %36, %21, %cst_17 {dimension_numbers = #tpu.dot_dimension_numbers<[1], [0], [0], [1], [0, 0, 1, 1], [], []>} : vector<16x16xf32>, vector<16x32xf32>, vector<16x32xf32> -> vector<16x32xf32>
    %c32_18 = arith.constant 32 : index
    %c0_19 = arith.constant 0 : index
    %38 = vector.load %arg1[%c32_18, %c0_19] : memref<112x128xf32, #tpu.memory_space<vmem>>, vector<32x32xf32>
    %cst_20 = arith.constant dense<0.000000e+00> : vector<16x32xf32>
    %39 = tpu.matmul %37, %38, %cst_20 {dimension_numbers = #tpu.dot_dimension_numbers<[1], [0], [0], [1], [0, 0, 1, 1], [], []>} : vector<16x32xf32>, vector<32x32xf32>, vector<16x32xf32> -> vector<16x32xf32>
    %c34 = arith.constant 34 : index
    %c64_21 = arith.constant 64 : index
    %40 = vector.load %arg1[%c34, %c64_21] : memref<112x128xf32, #tpu.memory_space<vmem>>, vector<1x32xf32>
    %41 = vector.broadcast %40 : vector<1x32xf32> to vector<16x32xf32>
    %42 = arith.addf %39, %41 : vector<16x32xf32>
    %43 = arith.addf %1, %42 : vector<16x32xf32>
    %cst_22 = arith.constant dense<0.000000e+00> : vector<16xf32>
    %44 = vector.multi_reduction <add>, %43, %cst_22 [1] : vector<16x32xf32> to vector<16xf32>
    %45 = vector.shape_cast %44 : vector<16xf32> to vector<16x1xf32>
    %cst_23 = arith.constant 3.200000e+01 : f32
    %46 = vector.broadcast %cst_23 : f32 to vector<16x1xf32>
    %47 = arith.divf %45, %46 : vector<16x1xf32>
    %48 = vector.broadcast %47 : vector<16x1xf32> to vector<16x32xf32>
    %49 = arith.subf %43, %48 : vector<16x32xf32>
    %50 = arith.mulf %49, %49 : vector<16x32xf32>
    %cst_24 = arith.constant dense<0.000000e+00> : vector<16xf32>
    %51 = vector.multi_reduction <add>, %50, %cst_24 [1] : vector<16x32xf32> to vector<16xf32>
    %52 = vector.shape_cast %51 : vector<16xf32> to vector<16x1xf32>
    %cst_25 = arith.constant 3.200000e+01 : f32
    %53 = vector.broadcast %cst_25 : f32 to vector<16x1xf32>
    %54 = arith.divf %52, %53 : vector<16x1xf32>
    %55 = vector.broadcast %47 : vector<16x1xf32> to vector<16x32xf32>
    %56 = arith.subf %43, %55 : vector<16x32xf32>
    %cst_26 = arith.constant 9.99999974E-6 : f32
    %57 = vector.broadcast %cst_26 : f32 to vector<16x1xf32>
    %58 = arith.addf %54, %57 : vector<16x1xf32>
    %59 = math.rsqrt %58 : vector<16x1xf32>
    %60 = vector.broadcast %59 : vector<16x1xf32> to vector<16x32xf32>
    %61 = arith.mulf %56, %60 : vector<16x32xf32>
    %c35 = arith.constant 35 : index
    %c64_27 = arith.constant 64 : index
    %62 = vector.load %arg1[%c35, %c64_27] : memref<112x128xf32, #tpu.memory_space<vmem>>, vector<1x32xf32>
    %63 = vector.broadcast %62 : vector<1x32xf32> to vector<16x32xf32>
    %64 = arith.mulf %61, %63 : vector<16x32xf32>
    %c36 = arith.constant 36 : index
    %c64_28 = arith.constant 64 : index
    %65 = vector.load %arg1[%c36, %c64_28] : memref<112x128xf32, #tpu.memory_space<vmem>>, vector<1x32xf32>
    %66 = vector.broadcast %65 : vector<1x32xf32> to vector<16x32xf32>
    %67 = arith.addf %64, %66 : vector<16x32xf32>
    %c32_29 = arith.constant 32 : index
    %c32_30 = arith.constant 32 : index
    %68 = vector.load %arg1[%c32_29, %c32_30] : memref<112x128xf32, #tpu.memory_space<vmem>>, vector<32x32xf32>
    %cst_31 = arith.constant dense<0.000000e+00> : vector<16x32xf32>
    %69 = tpu.matmul %67, %68, %cst_31 {dimension_numbers = #tpu.dot_dimension_numbers<[1], [0], [0], [1], [0, 0, 1, 1], [], []>} : vector<16x32xf32>, vector<32x32xf32>, vector<16x32xf32> -> vector<16x32xf32>
    %c37 = arith.constant 37 : index
    %c64_32 = arith.constant 64 : index
    %70 = vector.load %arg1[%c37, %c64_32] : memref<112x128xf32, #tpu.memory_space<vmem>>, vector<1x32xf32>
    %71 = vector.broadcast %70 : vector<1x32xf32> to vector<16x32xf32>
    %72 = arith.addf %69, %71 : vector<16x32xf32>
    %cst_33 = arith.constant 5.000000e-01 : f32
    %73 = vector.broadcast %cst_33 : f32 to vector<16x32xf32>
    %74 = arith.mulf %73, %72 : vector<16x32xf32>
    %cst_34 = arith.constant 1.41421354 : f32
    %75 = vector.broadcast %cst_34 : f32 to vector<16x32xf32>
    %76 = arith.divf %72, %75 : vector<16x32xf32>
    %77 = math.erf %76 : vector<16x32xf32>
    %cst_35 = arith.constant 1.000000e+00 : f32
    %78 = vector.broadcast %cst_35 : f32 to vector<16x32xf32>
    %79 = arith.addf %78, %77 : vector<16x32xf32>
    %80 = arith.mulf %74, %79 : vector<16x32xf32>
    %c0_36 = arith.constant 0 : index
    %c96 = arith.constant 96 : index
    %81 = vector.load %arg1[%c0_36, %c96] : memref<112x128xf32, #tpu.memory_space<vmem>>, vector<32x8xf32>
    %cst_37 = arith.constant dense<0.000000e+00> : vector<16x8xf32>
    %82 = tpu.matmul %80, %81, %cst_37 {dimension_numbers = #tpu.dot_dimension_numbers<[1], [0], [0], [1], [0, 0, 1, 1], [], []>} : vector<16x32xf32>, vector<32x8xf32>, vector<16x8xf32> -> vector<16x8xf32>
    %c16 = arith.constant 16 : index
    %c112_38 = arith.constant 112 : index
    %83 = vector.load %arg1[%c16, %c112_38] : memref<112x128xf32, #tpu.memory_space<vmem>>, vector<16x8xf32>
    %84 = arith.mulf %82, %83 : vector<16x8xf32>
    %cst_39 = arith.constant 0.000000e+00 : f32
    %85 = vector.broadcast %cst_39 : f32 to vector<8x8xf32>
    %c0_40 = arith.constant 0 : index
    %c0_41 = arith.constant 0 : index
    %86 = vector.load %arg3[%c0_40, %c0_41] : memref<32x8xf32, #tpu.memory_space<vmem>>, vector<8x8xf32>
    tpu.vector_store %arg3[%c0_40, %c0_41], %85 {strides = array<i32>} : memref<32x8xf32, #tpu.memory_space<vmem>>, vector<8x8xf32>,
    %cst_42 = arith.constant 0.000000e+00 : f32
    %87 = vector.broadcast %cst_42 : f32 to vector<8x8xf32>
    %c24 = arith.constant 24 : index
    %c0_43 = arith.constant 0 : index
    %88 = vector.load %arg3[%c24, %c0_43] : memref<32x8xf32, #tpu.memory_space<vmem>>, vector<8x8xf32>
    tpu.vector_store %arg3[%c24, %c0_43], %87 {strides = array<i32>} : memref<32x8xf32, #tpu.memory_space<vmem>>, vector<8x8xf32>,
    %c8 = arith.constant 8 : index
    %c0_44 = arith.constant 0 : index
    %89 = vector.load %arg3[%c8, %c0_44] : memref<32x8xf32, #tpu.memory_space<vmem>>, vector<16x8xf32>
    tpu.vector_store %arg3[%c8, %c0_44], %84 {strides = array<i32>} : memref<32x8xf32, #tpu.memory_space<vmem>>, vector<16x8xf32>,
    %c5 = arith.constant 5 : index
    %c0_45 = arith.constant 0 : index
    %90 = vector.load %arg3[%c5, %c0_45] : memref<32x8xf32, #tpu.memory_space<vmem>>, vector<16x1xf32>
    %c6 = arith.constant 6 : index
    %c1 = arith.constant 1 : index
    %91 = vector.load %arg3[%c6, %c1] : memref<32x8xf32, #tpu.memory_space<vmem>>, vector<16x1xf32>
    %92 = arith.addf %90, %91 : vector<16x1xf32>
    %c7 = arith.constant 7 : index
    %c2 = arith.constant 2 : index
    %93 = vector.load %arg3[%c7, %c2] : memref<32x8xf32, #tpu.memory_space<vmem>>, vector<16x1xf32>
    %94 = arith.addf %92, %93 : vector<16x1xf32>
    %c8_46 = arith.constant 8 : index
    %c3 = arith.constant 3 : index
    %95 = vector.load %arg3[%c8_46, %c3] : memref<32x8xf32, #tpu.memory_space<vmem>>, vector<16x1xf32>
    %96 = arith.addf %94, %95 : vector<16x1xf32>
    %c9 = arith.constant 9 : index
    %c4 = arith.constant 4 : index
    %97 = vector.load %arg3[%c9, %c4] : memref<32x8xf32, #tpu.memory_space<vmem>>, vector<16x1xf32>
    %98 = arith.addf %96, %97 : vector<16x1xf32>
    %c10 = arith.constant 10 : index
    %c5_47 = arith.constant 5 : index
    %99 = vector.load %arg3[%c10, %c5_47] : memref<32x8xf32, #tpu.memory_space<vmem>>, vector<16x1xf32>
    %100 = arith.addf %98, %99 : vector<16x1xf32>
    %c11 = arith.constant 11 : index
    %c6_48 = arith.constant 6 : index
    %101 = vector.load %arg3[%c11, %c6_48] : memref<32x8xf32, #tpu.memory_space<vmem>>, vector<16x1xf32>
    %102 = arith.addf %100, %101 : vector<16x1xf32>
    %c16_49 = arith.constant 16 : index
    %c120 = arith.constant 120 : index
    %103 = vector.load %arg1[%c16_49, %c120] : memref<112x128xf32, #tpu.memory_space<vmem>>, vector<16x1xf32>
    %104 = arith.addf %102, %103 : vector<16x1xf32>
    %105 = arith.negf %104 : vector<16x1xf32>
    %106 = math.exp %105 : vector<16x1xf32>
    %cst_50 = arith.constant 1.000000e+00 : f32
    %107 = vector.broadcast %cst_50 : f32 to vector<16x1xf32>
    %108 = arith.addf %107, %106 : vector<16x1xf32>
    %109 = arith.divf %107, %108 : vector<16x1xf32>
    %c0_51 = arith.constant 0 : index
    %c0_52 = arith.constant 0 : index
    %110 = vector.load %arg2[%c0_51, %c0_52] : memref<16x1xf32, #tpu.memory_space<vmem>>, vector<16x1xf32>
    tpu.vector_store %arg2[%c0_51, %c0_52], %109 {strides = array<i32>} : memref<16x1xf32, #tpu.memory_space<vmem>>, vector<16x1xf32>,
    return
  }
}

</mosaic_0001>

<llo_original>
// kernel: network_forward.1
$region0: #{network_forward.1}
  #allocation0 [shape = 'u32[]', space=smem, size = 0x4, offset = 0x4, fixed_abs, tag = 'smem constant byte address 0x4 - core index']
  #allocation1 [shape = 'u32[144,128]{1,0:T(1,128)}', space=vmem, size = 0x12000, scoped, tag = 'internal scratch']
  #allocation2 [shape = 'f32[32,8]{1,0:T(8,128)}', space=vmem, size = 0x4000, scoped, tag = 'scratch operand']
  %s0 = inlined_call_operand.vmem [shape: f32[16,80], index: 0, kind: input, shape index: {}]
  %s1 = inlined_call_operand.vmem [shape: f32[112,128], index: 1, kind: input, shape index: {}]
  %s2 = inlined_call_operand.vmem [shape: f32[16,1], index: 2, kind: output, shape index: {}]
  %s3 = sld [smem:[#allocation0]]
  $region18: #{network_forward.1} parent=0
    _
  %s5 = ssub.s32 1, %s3
  %s6 = scalar_select 0, %s5, %s3
  // Predicated region
  $region2: #{network_forward.1} parent=0 // pred_check
    _
  $region3: #{network_forward.1} parent=0 // pred_check_branch
    %8 = sbr.rel (0) target = $region5
  $region4: #{network_forward.1} parent=0 // pred_region
    _
  $region5: #{network_forward.1} parent=0 // pred_fallthru
    _
  // Predicated region
  $region6: #{network_forward.1} parent=0 // pred_check
    _
  $region7: #{network_forward.1} parent=0 // pred_check_branch
    %10 = sbr.rel (0) target = $region9
  $region8: #{network_forward.1} parent=0 // pred_region
    _
  $region9: #{network_forward.1} parent=0 // pred_fallthru
    _
  %v11 = vld [vmem:[%s0] sm:$0xff]
  %v12 = vld [vmem:[%s0 + $0x8] sm:$0xff]
  %v13 = vld [vmem:[%s1 + $0x40] sm:$0xff]
  %v14 = vld [vmem:[%s1 + $0x48] sm:$0xff]
  %v15 = vld [vmem:[%s1 + $0x50] sm:$0xff]
  %v16 = vld [vmem:[%s1 + $0x58] sm:$0xff]
  %v17 = vld [vmem:[%s1 + $0x60] sm:$0xff]
  %v18 = vld [vmem:[%s1 + $0x68] sm:$0xff]
  %v19 = vld [vmem:[%s1 + $0x20] sm:$0x1]
  %v20 = vlaneseq
  %v21 = vshrl.u32 %v20, 7
  %v22 = vsub.s32 0, %v21
  %v23 = vrot.slane %v19, %v22
  %26 = vrot.lane.b32.xlu0 %v11, 96
  %v27 = vpop.permute.xlu0 %26
  %28 = vrot.lane.b32.xlu0 %v12, 96
  %v29 = vpop.permute.xlu0 %28
  %31 = vrot.lane.b32.xlu0 %v23, 64
  %v32 = vpop.permute.xlu0 %31
  %vm34 = vcmask 392192
  %v35 = vsel %vm34, %v27, 0
  %v37 = vsel %vm34, %v29, 0
  %39 = vmatprep.subr.mxu0 0.0
  %40 = vmatpush1.msra.mxu0 %v13
  %41 = vmatprep.subr.mxu0 0.0
  %42 = vmatpush1.msra.mxu0 %v14
  %43 = vmatprep.subr.mxu0 0.0
  %44 = vmatpush1.msra.mxu0 %v15
  %45 = vmatprep.subr.mxu0 0.0
  %46 = vmatpush1.msra.mxu0 %v16
  %47 = vmatprep.subr.mxu0 0.0
  %48 = vmatpush1.msra.mxu0 %v17
  %49 = vmatprep.subr.mxu0 0.0
  %50 = vmatpush1.msra.mxu0 %v18
  %51 = vmatprep.subr.mxu0 0.0
  %52 = vmatpush1.msra.mxu0 0.0
  %53 = vmatprep.subr.mxu0 0.0
  %54 = vmatpush1.msra.mxu0 0.0
  %55 = vmatprep.subr.mxu0 0.0
  %56 = vmatpush1.msra.mxu0 0.0
  %57 = vmatprep.subr.mxu0 0.0
  %58 = vmatpush1.msra.mxu0 0.0
  %59 = vmatprep.subr.mxu0 0.0
  %60 = vmatpush1.msra.mxu0 0.0
  %61 = vmatprep.subr.mxu0 0.0
  %62 = vmatpush1.msra.mxu0 0.0
  %63 = vmatprep.subr.mxu0 0.0
  %64 = vmatpush1.msra.mxu0 0.0
  %65 = vmatprep.subr.mxu0 0.0
  %66 = vmatpush1.msra.mxu0 0.0
  %67 = vmatprep.subr.mxu0 0.0
  %68 = vmatpush1.msra.mxu0 0.0
  %69 = vmatprep.subr.mxu0 0.0
  %70 = vmatpush1.msra.mxu0 0.0
  %71 = vmatprep.subr.mxu0 0.0
  %72 = vmatpush1.msra.mxu0 0.0
  %73 = vmatprep.subr.mxu0 0.0
  %74 = vmatpush1.msra.mxu0 0.0
  %75 = vmatprep.subr.mxu0 0.0
  %76 = vmatpush1.msra.mxu0 0.0
  %77 = vmatprep.subr.mxu0 0.0
  %78 = vmatpush1.msra.mxu0 0.0
  %79 = vmatprep.subr.mxu0 0.0
  %80 = vmatpush1.msra.mxu0 0.0
  %81 = vmatprep.subr.mxu0 0.0
  %82 = vmatpush1.msra.mxu0 0.0
  %83 = vmatprep.subr.mxu0 0.0
  %84 = vmatpush1.msra.mxu0 0.0
  %85 = vmatprep.subr.mxu0 0.0
  %86 = vmatpush1.msra.mxu0 0.0
  %87 = vmatprep.subr.mxu0 0.0
  %88 = vmatpush1.msra.mxu0 0.0
  %89 = vmatprep.subr.mxu0 0.0
  %90 = vmatpush1.msra.mxu0 0.0
  %91 = vmatprep.subr.mxu0 0.0
  %92 = vmatpush1.msra.mxu0 0.0
  %93 = vmatprep.subr.mxu0 0.0
  %94 = vmatpush1.msra.mxu0 0.0
  %95 = vmatprep.subr.mxu0 0.0
  %96 = vmatpush1.msra.mxu0 0.0
  %97 = vmatprep.subr.mxu0 0.0
  %98 = vmatpush1.msra.mxu0 0.0
  %99 = vmatprep.subr.mxu0 0.0
  %100 = vmatpush1.msra.mxu0 0.0
  %101 = vmatprep.subr.mxu0 0.0
  %102 = vmatpush1.msra.mxu0 0.0
  %103 = vmatprep.mubr.f32.mxu0 0.0
  %104 = vmatmul.mubr.f32.gmra.mrb[0].mxu0 %v35
  %v105 = vpop.f32.mrb[0].mxu0
  %v106 = vadd.f32 %v32, %v105
  %v107 = vpop.f32.mrb[0].mxu0
  %108 = vmatprep.mubr.f32.mxu0 0.0
  %109 = vmatmul.mubr.f32.gmra.mrb[0].mxu0 %v37
  %v110 = vpop.f32.mrb[0].mxu0
  %v111 = vadd.f32 %v32, %v110
  %v112 = vpop.f32.mrb[0].mxu0
  %113 = vdwg.mxu0
  %v114 = vmax.f32 %v106, 0.0
  %v115 = vmax.f32 %v111, 0.0
  %v116 = vld [vmem:[%s1] sm:$0xff]
  %v117 = vld [vmem:[%s1 + $0x8] sm:$0xff]
  %v118 = vld [vmem:[%s1 + $0x10] sm:$0xff]
  %v119 = vld [vmem:[%s1 + $0x18] sm:$0xff]
  %v120 = vld [vmem:[%s1 + $0x21] sm:$0x1]
  %v121 = vlaneseq
  %v122 = vshrl.u32 %v121, 7
  %v123 = vsub.s32 0, %v122
  %v124 = vrot.slane %v120, %v123
  %126 = vrot.lane.b32.xlu0 %v124, 64
  %v127 = vpop.permute.xlu0 %126
  %vm129 = vcmask 261120
  %v131 = vsel %vm129, %v114, 0
  %v134 = vsel %vm129, %v115, 0
  %136 = vmatprep.subr.mxu0 0.0
  %137 = vmatpush1.msra.mxu0 %v116
  %138 = vmatprep.subr.mxu0 0.0
  %139 = vmatpush1.msra.mxu0 %v117
  %140 = vmatprep.subr.mxu0 0.0
  %141 = vmatpush1.msra.mxu0 %v118
  %142 = vmatprep.subr.mxu0 0.0
  %143 = vmatpush1.msra.mxu0 %v119
  %144 = vmatprep.subr.mxu0 0.0
  %145 = vmatpush1.msra.mxu0 0.0
  %146 = vmatprep.subr.mxu0 0.0
  %147 = vmatpush1.msra.mxu0 0.0
  %148 = vmatprep.subr.mxu0 0.0
  %149 = vmatpush1.msra.mxu0 0.0
  %150 = vmatprep.subr.mxu0 0.0
  %151 = vmatpush1.msra.mxu0 0.0
  %152 = vmatprep.subr.mxu0 0.0
  %153 = vmatpush1.msra.mxu0 0.0
  %154 = vmatprep.subr.mxu0 0.0
  %155 = vmatpush1.msra.mxu0 0.0
  %156 = vmatprep.subr.mxu0 0.0
  %157 = vmatpush1.msra.mxu0 0.0
  %158 = vmatprep.subr.mxu0 0.0
  %159 = vmatpush1.msra.mxu0 0.0
  %160 = vmatprep.subr.mxu0 0.0
  %161 = vmatpush1.msra.mxu0 0.0
  %162 = vmatprep.subr.mxu0 0.0
  %163 = vmatpush1.msra.mxu0 0.0
  %164 = vmatprep.subr.mxu0 0.0
  %165 = vmatpush1.msra.mxu0 0.0
  %166 = vmatprep.subr.mxu0 0.0
  %167 = vmatpush1.msra.mxu0 0.0
  %168 = vmatprep.subr.mxu0 0.0
  %169 = vmatpush1.msra.mxu0 0.0
  %170 = vmatprep.subr.mxu0 0.0
  %171 = vmatpush1.msra.mxu0 0.0
  %172 = vmatprep.subr.mxu0 0.0
  %173 = vmatpush1.msra.mxu0 0.0
  %174 = vmatprep.subr.mxu0 0.0
  %175 = vmatpush1.msra.mxu0 0.0
  %176 = vmatprep.subr.mxu0 0.0
  %177 = vmatpush1.msra.mxu0 0.0
  %178 = vmatprep.subr.mxu0 0.0
  %179 = vmatpush1.msra.mxu0 0.0
  %180 = vmatprep.subr.mxu0 0.0
  %181 = vmatpush1.msra.mxu0 0.0
  %182 = vmatprep.subr.mxu0 0.0
  %183 = vmatpush1.msra.mxu0 0.0
  %184 = vmatprep.subr.mxu0 0.0
  %185 = vmatpush1.msra.mxu0 0.0
  %186 = vmatprep.subr.mxu0 0.0
  %187 = vmatpush1.msra.mxu0 0.0
  %188 = vmatprep.subr.mxu0 0.0
  %189 = vmatpush1.msra.mxu0 0.0
  %190 = vmatprep.subr.mxu0 0.0
  %191 = vmatpush1.msra.mxu0 0.0
  %192 = vmatprep.subr.mxu0 0.0
  %193 = vmatpush1.msra.mxu0 0.0
  %194 = vmatprep.subr.mxu0 0.0
  %195 = vmatpush1.msra.mxu0 0.0
  %196 = vmatprep.subr.mxu0 0.0
  %197 = vmatpush1.msra.mxu0 0.0
  %198 = vmatprep.subr.mxu0 0.0
  %199 = vmatpush1.msra.mxu0 0.0
  %200 = vmatprep.mubr.f32.mxu0 0.0
  %201 = vmatmul.mubr.f32.gmra.mrb[0].mxu0 %v131
  %v202 = vpop.f32.mrb[0].mxu0
  %v203 = vadd.f32 %v127, %v202
  %v204 = vpop.f32.mrb[0].mxu0
  %205 = vmatprep.mubr.f32.mxu0 0.0
  %206 = vmatmul.mubr.f32.gmra.mrb[0].mxu0 %v134
  %v207 = vpop.f32.mrb[0].mxu0
  %v208 = vadd.f32 %v127, %v207
  %v209 = vpop.f32.mrb[0].mxu0
  %210 = vdwg.mxu0
  %v211 = vld [vmem:[%s1 + $0x26] sm:$0x1]
  %v212 = vlaneseq
  %v213 = vshrl.u32 %v212, 7
  %v214 = vsub.s32 0, %v213
  %v215 = vrot.slane %v211, %v214
  %220 = vrot.lane.b32.xlu0 %v116, 96
  %v221 = vpop.permute.xlu0 %220
  %222 = vrot.lane.b32.xlu0 %v117, 96
  %v223 = vpop.permute.xlu0 %222
  %224 = vrot.lane.b32.xlu0 %v118, 96
  %v225 = vpop.permute.xlu0 %224
  %226 = vrot.lane.b32.xlu0 %v119, 96
  %v227 = vpop.permute.xlu0 %226
  %233 = vrot.lane.b32.xlu0 %v215, 64
  %v234 = vpop.permute.xlu0 %233
  %v236 = vsel %vm129, %v11, 0
  %v238 = vsel %vm129, %v12, 0
  %240 = vmatprep.subr.mxu0 0.0
  %241 = vmatpush1.msra.mxu0 %v221
  %242 = vmatprep.subr.mxu0 0.0
  %243 = vmatpush1.msra.mxu0 %v223
  %244 = vmatprep.subr.mxu0 0.0
  %245 = vmatpush1.msra.mxu0 %v225
  %246 = vmatprep.subr.mxu0 0.0
  %247 = vmatpush1.msra.mxu0 %v227
  %248 = vmatprep.subr.mxu0 0.0
  %249 = vmatpush1.msra.mxu0 0.0
  %250 = vmatprep.subr.mxu0 0.0
  %251 = vmatpush1.msra.mxu0 0.0
  %252 = vmatprep.subr.mxu0 0.0
  %253 = vmatpush1.msra.mxu0 0.0
  %254 = vmatprep.subr.mxu0 0.0
  %255 = vmatpush1.msra.mxu0 0.0
  %256 = vmatprep.subr.mxu0 0.0
  %257 = vmatpush1.msra.mxu0 0.0
  %258 = vmatprep.subr.mxu0 0.0
  %259 = vmatpush1.msra.mxu0 0.0
  %260 = vmatprep.subr.mxu0 0.0
  %261 = vmatpush1.msra.mxu0 0.0
  %262 = vmatprep.subr.mxu0 0.0
  %263 = vmatpush1.msra.mxu0 0.0
  %264 = vmatprep.subr.mxu0 0.0
  %265 = vmatpush1.msra.mxu0 0.0
  %266 = vmatprep.subr.mxu0 0.0
  %267 = vmatpush1.msra.mxu0 0.0
  %268 = vmatprep.subr.mxu0 0.0
  %269 = vmatpush1.msra.mxu0 0.0
  %270 = vmatprep.subr.mxu0 0.0
  %271 = vmatpush1.msra.mxu0 0.0
  %272 = vmatprep.subr.mxu0 0.0
  %273 = vmatpush1.msra.mxu0 0.0
  %274 = vmatprep.subr.mxu0 0.0
  %275 = vmatpush1.msra.mxu0 0.0
  %276 = vmatprep.subr.mxu0 0.0
  %277 = vmatpush1.msra.mxu0 0.0
  %278 = vmatprep.subr.mxu0 0.0
  %279 = vmatpush1.msra.mxu0 0.0
  %280 = vmatprep.subr.mxu0 0.0
  %281 = vmatpush1.msra.mxu0 0.0
  %282 = vmatprep.subr.mxu0 0.0
  %283 = vmatpush1.msra.mxu0 0.0
  %284 = vmatprep.subr.mxu0 0.0
  %285 = vmatpush1.msra.mxu0 0.0
  %286 = vmatprep.subr.mxu0 0.0
  %287 = vmatpush1.msra.mxu0 0.0
  %288 = vmatprep.subr.mxu0 0.0
  %289 = vmatpush1.msra.mxu0 0.0
  %290 = vmatprep.subr.mxu0 0.0
  %291 = vmatpush1.msra.mxu0 0.0
  %292 = vmatprep.subr.mxu0 0.0
  %293 = vmatpush1.msra.mxu0 0.0
  %294 = vmatprep.subr.mxu0 0.0
  %295 = vmatpush1.msra.mxu0 0.0
  %296 = vmatprep.subr.mxu0 0.0
  %297 = vmatpush1.msra.mxu0 0.0
  %298 = vmatprep.subr.mxu0 0.0
  %299 = vmatpush1.msra.mxu0 0.0
  %300 = vmatprep.subr.mxu0 0.0
  %301 = vmatpush1.msra.mxu0 0.0
  %302 = vmatprep.subr.mxu0 0.0
  %303 = vmatpush1.msra.mxu0 0.0
  %304 = vmatprep.mubr.f32.mxu0 0.0
  %305 = vmatmul.mubr.f32.gmra.mrb[0].mxu0 %v236
  %v306 = vpop.f32.mrb[0].mxu0
  %v307 = vadd.f32 %v234, %v306
  %v308 = vpop.f32.mrb[0].mxu0
  %309 = vmatprep.mubr.f32.mxu0 0.0
  %310 = vmatmul.mubr.f32.gmra.mrb[0].mxu0 %v238
  %v311 = vpop.f32.mrb[0].mxu0
  %v312 = vadd.f32 %v234, %v311
  %v313 = vpop.f32.mrb[0].mxu0
  %314 = vdwg.mxu0
  %v316 = vsel %vm129, %v203, 0
  %v319 = vsel %vm129, %v208, 0
  %v322 = vsel %vm129, %v307, 0
  %v325 = vsel %vm129, %v312, 0
  %327 = vmatprep.subr.mxu0 0.0
  %328 = vmatpush1.xpose.msra.mxu0 %v322
  %329 = vmatprep.subr.mxu0 0.0
  %330 = vmatpush1.xpose.msra.mxu0 %v325
  %331 = vmatprep.subr.mxu0 0.0
  %332 = vmatpush1.xpose.msra.mxu0 0.0
  %333 = vmatprep.subr.mxu0 0.0
  %334 = vmatpush1.xpose.msra.mxu0 0.0
  %335 = vmatprep.subr.mxu0 0.0
  %336 = vmatpush1.xpose.msra.mxu0 0.0
  %337 = vmatprep.subr.mxu0 0.0
  %338 = vmatpush1.xpose.msra.mxu0 0.0
  %339 = vmatprep.subr.mxu0 0.0
  %340 = vmatpush1.xpose.msra.mxu0 0.0
  %341 = vmatprep.subr.mxu0 0.0
  %342 = vmatpush1.xpose.msra.mxu0 0.0
  %343 = vmatprep.subr.mxu0 0.0
  %344 = vmatpush1.xpose.msra.mxu0 0.0
  %345 = vmatprep.subr.mxu0 0.0
  %346 = vmatpush1.xpose.msra.mxu0 0.0
  %347 = vmatprep.subr.mxu0 0.0
  %348 = vmatpush1.xpose.msra.mxu0 0.0
  %349 = vmatprep.subr.mxu0 0.0
  %350 = vmatpush1.xpose.msra.mxu0 0.0
  %351 = vmatprep.subr.mxu0 0.0
  %352 = vmatpush1.xpose.msra.mxu0 0.0
  %353 = vmatprep.subr.mxu0 0.0
  %354 = vmatpush1.xpose.msra.mxu0 0.0
  %355 = vmatprep.subr.mxu0 0.0
  %356 = vmatpush1.xpose.msra.mxu0 0.0
  %357 = vmatprep.subr.mxu0 0.0
  %358 = vmatpush1.xpose.msra.mxu0 0.0
  %359 = vmatprep.subr.mxu0 0.0
  %360 = vmatpush1.xpose.msra.mxu0 0.0
  %361 = vmatprep.subr.mxu0 0.0
  %362 = vmatpush1.xpose.msra.mxu0 0.0
  %363 = vmatprep.subr.mxu0 0.0
  %364 = vmatpush1.xpose.msra.mxu0 0.0
  %365 = vmatprep.subr.mxu0 0.0
  %366 = vmatpush1.xpose.msra.mxu0 0.0
  %367 = vmatprep.subr.mxu0 0.0
  %368 = vmatpush1.xpose.msra.mxu0 0.0
  %369 = vmatprep.subr.mxu0 0.0
  %370 = vmatpush1.xpose.msra.mxu0 0.0
  %371 = vmatprep.subr.mxu0 0.0
  %372 = vmatpush1.xpose.msra.mxu0 0.0
  %373 = vmatprep.subr.mxu0 0.0
  %374 = vmatpush1.xpose.msra.mxu0 0.0
  %375 = vmatprep.subr.mxu0 0.0
  %376 = vmatpush1.xpose.msra.mxu0 0.0
  %377 = vmatprep.subr.mxu0 0.0
  %378 = vmatpush1.xpose.msra.mxu0 0.0
  %379 = vmatprep.subr.mxu0 0.0
  %380 = vmatpush1.xpose.msra.mxu0 0.0
  %381 = vmatprep.subr.mxu0 0.0
  %382 = vmatpush1.xpose.msra.mxu0 0.0
  %383 = vmatprep.subr.mxu0 0.0
  %384 = vmatpush1.xpose.msra.mxu0 0.0
  %385 = vmatprep.subr.mxu0 0.0
  %386 = vmatpush1.xpose.msra.mxu0 0.0
  %387 = vmatprep.subr.mxu0 0.0
  %388 = vmatpush1.xpose.msra.mxu0 0.0
  %389 = vmatprep.subr.mxu0 0.0
  %390 = vmatpush1.xpose.msra.mxu0 0.0
  %391 = vmatprep.mubr.f32.mxu0 0.0
  %392 = vmatmul.mubr.f32.gmra.mrb[0].mxu0 %v316
  %v393 = vpop.f32.mrb[0].mxu0
  %v394 = vadd.f32 0.0, %v393
  %v395 = vpop.f32.mrb[0].mxu0
  %396 = vmatprep.mubr.f32.mxu0 0.0
  %397 = vmatmul.mubr.f32.gmra.mrb[0].mxu0 %v319
  %v398 = vpop.f32.mrb[0].mxu0
  %v399 = vadd.f32 0.0, %v398
  %v400 = vpop.f32.mrb[0].mxu0
  %401 = vdwg.mxu0
  %v402 = vmul.f32 %v394, 0.17677669
  %v403 = vmul.f32 %v399, 0.17677669
  %v404 = vld [vmem:[%s1] sm:$0xff]
  %v405 = vld [vmem:[%s1 + $0x8] sm:$0xff]
  %408 = vrot.lane.b32.xlu0 %v404, 16
  %v409 = vpop.permute.xlu0 %408
  %410 = vrot.lane.b32.xlu0 %v405, 16
  %v411 = vpop.permute.xlu0 %410
  %v414 = vadd.f32 %v402, %v409
  %v415 = vadd.f32 %v403, %v411
  %vm416 = vcmask 130048
  %v417 = vsel %vm416, %v414, -inf
  %418 = vmax.xlane.f32.xlu0 %v417
  %v419 = vpop.xlane.xlu0 %418
  %v420 = vsel %vm416, %v415, -inf
  %421 = vmax.xlane.f32.xlu0 %v420
  %v422 = vpop.xlane.xlu0 %421
  %v423 = vsub.f32 %v414, %v419
  %v424 = vsub.f32 %v415, %v422
  %v425 = vmul.f32 %v423, 1.442695
  %v426 = vpow.pop %v425
  %v427 = vmul.f32 %v424, 1.442695
  %v428 = vpow.pop %v427
  %v429 = vsel %vm416, %v426, 0.0
  %430 = vadd.xlane.f32.xlu0 %v429
  %v431 = vpop.xlane.xlu0 %430
  %v432 = vsel %vm416, %v428, 0.0
  %433 = vadd.xlane.f32.xlu0 %v432
  %v434 = vpop.xlane.xlu0 %433
  %v435 = vrcp.pop %v431
  %v436 = vrcp.pop %v434
  %v437 = vmul.f32 %v426, %v435
  %v438 = vmul.f32 %v428, %v436
  %439 = vrot.lane.b32.xlu0 %v307, 96
  %v440 = vpop.permute.xlu0 %439
  %441 = vrot.lane.b32.xlu0 %v312, 96
  %v442 = vpop.permute.xlu0 %441
  %v446 = vsel %vm416, %v437, 0
  %v449 = vsel %vm416, %v438, 0
  %451 = vmatprep.subr.mxu0 0.0
  %452 = vmatpush1.msra.mxu0 %v440
  %453 = vmatprep.subr.mxu0 0.0
  %454 = vmatpush1.msra.mxu0 %v442
  %455 = vmatprep.subr.mxu0 0.0
  %456 = vmatpush1.msra.mxu0 0.0
  %457 = vmatprep.subr.mxu0 0.0
  %458 = vmatpush1.msra.mxu0 0.0
  %459 = vmatprep.subr.mxu0 0.0
  %460 = vmatpush1.msra.mxu0 0.0
  %461 = vmatprep.subr.mxu0 0.0
  %462 = vmatpush1.msra.mxu0 0.0
  %463 = vmatprep.subr.mxu0 0.0
  %464 = vmatpush1.msra.mxu0 0.0
  %465 = vmatprep.subr.mxu0 0.0
  %466 = vmatpush1.msra.mxu0 0.0
  %467 = vmatprep.subr.mxu0 0.0
  %468 = vmatpush1.msra.mxu0 0.0
  %469 = vmatprep.subr.mxu0 0.0
  %470 = vmatpush1.msra.mxu0 0.0
  %471 = vmatprep.subr.mxu0 0.0
  %472 = vmatpush1.msra.mxu0 0.0
  %473 = vmatprep.subr.mxu0 0.0
  %474 = vmatpush1.msra.mxu0 0.0
  %475 = vmatprep.subr.mxu0 0.0
  %476 = vmatpush1.msra.mxu0 0.0
  %477 = vmatprep.subr.mxu0 0.0
  %478 = vmatpush1.msra.mxu0 0.0
  %479 = vmatprep.subr.mxu0 0.0
  %480 = vmatpush1.msra.mxu0 0.0
  %481 = vmatprep.subr.mxu0 0.0
  %482 = vmatpush1.msra.mxu0 0.0
  %483 = vmatprep.subr.mxu0 0.0
  %484 = vmatpush1.msra.mxu0 0.0
  %485 = vmatprep.subr.mxu0 0.0
  %486 = vmatpush1.msra.mxu0 0.0
  %487 = vmatprep.subr.mxu0 0.0
  %488 = vmatpush1.msra.mxu0 0.0
  %489 = vmatprep.subr.mxu0 0.0
  %490 = vmatpush1.msra.mxu0 0.0
  %491 = vmatprep.subr.mxu0 0.0
  %492 = vmatpush1.msra.mxu0 0.0
  %493 = vmatprep.subr.mxu0 0.0
  %494 = vmatpush1.msra.mxu0 0.0
  %495 = vmatprep.subr.mxu0 0.0
  %496 = vmatpush1.msra.mxu0 0.0
  %497 = vmatprep.subr.mxu0 0.0
  %498 = vmatpush1.msra.mxu0 0.0
  %499 = vmatprep.subr.mxu0 0.0
  %500 = vmatpush1.msra.mxu0 0.0
  %501 = vmatprep.subr.mxu0 0.0
  %502 = vmatpush1.msra.mxu0 0.0
  %503 = vmatprep.subr.mxu0 0.0
  %504 = vmatpush1.msra.mxu0 0.0
  %505 = vmatprep.subr.mxu0 0.0
  %506 = vmatpush1.msra.mxu0 0.0
  %507 = vmatprep.subr.mxu0 0.0
  %508 = vmatpush1.msra.mxu0 0.0
  %509 = vmatprep.subr.mxu0 0.0
  %510 = vmatpush1.msra.mxu0 0.0
  %511 = vmatprep.subr.mxu0 0.0
  %512 = vmatpush1.msra.mxu0 0.0
  %513 = vmatprep.subr.mxu0 0.0
  %514 = vmatpush1.msra.mxu0 0.0
  %515 = vmatprep.mubr.f32.mxu0 0.0
  %516 = vmatmul.mubr.f32.gmra.mrb[0].mxu0 %v446
  %v517 = vpop.f32.mrb[0].mxu0
  %v518 = vadd.f32 0.0, %v517
  %v519 = vpop.f32.mrb[0].mxu0
  %520 = vmatprep.mubr.f32.mxu0 0.0
  %521 = vmatmul.mubr.f32.gmra.mrb[0].mxu0 %v449
  %v522 = vpop.f32.mrb[0].mxu0
  %v523 = vadd.f32 0.0, %v522
  %v524 = vpop.f32.mrb[0].mxu0
  %525 = vdwg.mxu0
  %v526 = vld [vmem:[%s1 + $0x20] sm:$0xff]
  %v527 = vld [vmem:[%s1 + $0x28] sm:$0xff]
  %v528 = vld [vmem:[%s1 + $0x30] sm:$0xff]
  %v529 = vld [vmem:[%s1 + $0x38] sm:$0xff]
  %v530 = vld [vmem:[%s1 + $0x22] sm:$0x1]
  %v531 = vlaneseq
  %v532 = vshrl.u32 %v531, 7
  %v533 = vsub.s32 0, %v532
  %v534 = vrot.slane %v530, %v533
  %536 = vrot.lane.b32.xlu0 %v534, 64
  %v537 = vpop.permute.xlu0 %536
  %v540 = vsel %vm129, %v518, 0
  %v543 = vsel %vm129, %v523, 0
  %545 = vmatprep.subr.mxu0 0.0
  %546 = vmatpush1.msra.mxu0 %v526
  %547 = vmatprep.subr.mxu0 0.0
  %548 = vmatpush1.msra.mxu0 %v527
  %549 = vmatprep.subr.mxu0 0.0
  %550 = vmatpush1.msra.mxu0 %v528
  %551 = vmatprep.subr.mxu0 0.0
  %552 = vmatpush1.msra.mxu0 %v529
  %553 = vmatprep.subr.mxu0 0.0
  %554 = vmatpush1.msra.mxu0 0.0
  %555 = vmatprep.subr.mxu0 0.0
  %556 = vmatpush1.msra.mxu0 0.0
  %557 = vmatprep.subr.mxu0 0.0
  %558 = vmatpush1.msra.mxu0 0.0
  %559 = vmatprep.subr.mxu0 0.0
  %560 = vmatpush1.msra.mxu0 0.0
  %561 = vmatprep.subr.mxu0 0.0
  %562 = vmatpush1.msra.mxu0 0.0
  %563 = vmatprep.subr.mxu0 0.0
  %564 = vmatpush1.msra.mxu0 0.0
  %565 = vmatprep.subr.mxu0 0.0
  %566 = vmatpush1.msra.mxu0 0.0
  %567 = vmatprep.subr.mxu0 0.0
  %568 = vmatpush1.msra.mxu0 0.0
  %569 = vmatprep.subr.mxu0 0.0
  %570 = vmatpush1.msra.mxu0 0.0
  %571 = vmatprep.subr.mxu0 0.0
  %572 = vmatpush1.msra.mxu0 0.0
  %573 = vmatprep.subr.mxu0 0.0
  %574 = vmatpush1.msra.mxu0 0.0
  %575 = vmatprep.subr.mxu0 0.0
  %576 = vmatpush1.msra.mxu0 0.0
  %577 = vmatprep.subr.mxu0 0.0
  %578 = vmatpush1.msra.mxu0 0.0
  %579 = vmatprep.subr.mxu0 0.0
  %580 = vmatpush1.msra.mxu0 0.0
  %581 = vmatprep.subr.mxu0 0.0
  %582 = vmatpush1.msra.mxu0 0.0
  %583 = vmatprep.subr.mxu0 0.0
  %584 = vmatpush1.msra.mxu0 0.0
  %585 = vmatprep.subr.mxu0 0.0
  %586 = vmatpush1.msra.mxu0 0.0
  %587 = vmatprep.subr.mxu0 0.0
  %588 = vmatpush1.msra.mxu0 0.0
  %589 = vmatprep.subr.mxu0 0.0
  %590 = vmatpush1.msra.mxu0 0.0
  %591 = vmatprep.subr.mxu0 0.0
  %592 = vmatpush1.msra.mxu0 0.0
  %593 = vmatprep.subr.mxu0 0.0
  %594 = vmatpush1.msra.mxu0 0.0
  %595 = vmatprep.subr.mxu0 0.0
  %596 = vmatpush1.msra.mxu0 0.0
  %597 = vmatprep.subr.mxu0 0.0
  %598 = vmatpush1.msra.mxu0 0.0
  %599 = vmatprep.subr.mxu0 0.0
  %600 = vmatpush1.msra.mxu0 0.0
  %601 = vmatprep.subr.mxu0 0.0
  %602 = vmatpush1.msra.mxu0 0.0
  %603 = vmatprep.subr.mxu0 0.0
  %604 = vmatpush1.msra.mxu0 0.0
  %605 = vmatprep.subr.mxu0 0.0
  %606 = vmatpush1.msra.mxu0 0.0
  %607 = vmatprep.subr.mxu0 0.0
  %608 = vmatpush1.msra.mxu0 0.0
  %609 = vmatprep.mubr.f32.mxu0 0.0
  %610 = vmatmul.mubr.f32.gmra.mrb[0].mxu0 %v540
  %v611 = vpop.f32.mrb[0].mxu0
  %v612 = vadd.f32 %v537, %v611
  %v613 = vpop.f32.mrb[0].mxu0
  %614 = vmatprep.mubr.f32.mxu0 0.0
  %615 = vmatmul.mubr.f32.gmra.mrb[0].mxu0 %v543
  %v616 = vpop.f32.mrb[0].mxu0
  %v617 = vadd.f32 %v537, %v616
  %v618 = vpop.f32.mrb[0].mxu0
  %619 = vdwg.mxu0
  %v620 = vadd.f32 %v11, %v612
  %v621 = vadd.f32 %v12, %v617
  %v622 = vsel %vm129, %v620, 0.0
  %623 = vadd.xlane.f32.xlu0 %v622
  %v624 = vpop.xlane.xlu0 %623
  %v625 = vsel %vm129, %v621, 0.0
  %626 = vadd.xlane.f32.xlu0 %v625
  %v627 = vpop.xlane.xlu0 %626
  %v628 = vrcp.pop 32.0
  %v629 = vmul.f32 %v624, %v628
  %v630 = vmul.f32 %v627, %v628
  %v631 = vsub.f32 %v620, %v629
  %v632 = vsub.f32 %v621, %v630
  %v633 = vmul.f32 %v631, %v631
  %v634 = vmul.f32 %v632, %v632
  %v635 = vsel %vm129, %v633, 0.0
  %636 = vadd.xlane.f32.xlu0 %v635
  %v637 = vpop.xlane.xlu0 %636
  %v638 = vsel %vm129, %v634, 0.0
  %639 = vadd.xlane.f32.xlu0 %v638
  %v640 = vpop.xlane.xlu0 %639
  %v641 = vmul.f32 %v637, %v628
  %v642 = vmul.f32 %v640, %v628
  %v643 = vadd.f32 %v641, 1e-05
  %v644 = vadd.f32 %v642, 1e-05
  %v645 = vrsqrt.pop %v643
  %v646 = vrsqrt.pop %v644
  %v647 = vmul.f32 %v631, %v645
  %v648 = vmul.f32 %v632, %v646
  %v649 = vld [vmem:[%s1 + $0x23] sm:$0x1]
  %v650 = vlaneseq
  %v651 = vshrl.u32 %v650, 7
  %v652 = vsub.s32 0, %v651
  %v653 = vrot.slane %v649, %v652
  %655 = vrot.lane.b32.xlu0 %v653, 64
  %v656 = vpop.permute.xlu0 %655
  %v658 = vmul.f32 %v647, %v656
  %v659 = vmul.f32 %v648, %v656
  %v660 = vld [vmem:[%s1 + $0x24] sm:$0x1]
  %v661 = vlaneseq
  %v662 = vshrl.u32 %v661, 7
  %v663 = vsub.s32 0, %v662
  %v664 = vrot.slane %v660, %v663
  %666 = vrot.lane.b32.xlu0 %v664, 64
  %v667 = vpop.permute.xlu0 %666
  %v669 = vadd.f32 %v658, %v667
  %v670 = vadd.f32 %v659, %v667
  %v671 = vld [vmem:[%s1 + $0x25] sm:$0x1]
  %v672 = vlaneseq
  %v673 = vshrl.u32 %v672, 7
  %v674 = vsub.s32 0, %v673
  %v675 = vrot.slane %v671, %v674
  %680 = vrot.lane.b32.xlu0 %v526, 96
  %v681 = vpop.permute.xlu0 %680
  %682 = vrot.lane.b32.xlu0 %v527, 96
  %v683 = vpop.permute.xlu0 %682
  %684 = vrot.lane.b32.xlu0 %v528, 96
  %v685 = vpop.permute.xlu0 %684
  %686 = vrot.lane.b32.xlu0 %v529, 96
  %v687 = vpop.permute.xlu0 %686
  %693 = vrot.lane.b32.xlu0 %v675, 64
  %v694 = vpop.permute.xlu0 %693
  %v697 = vsel %vm129, %v669, 0
  %v700 = vsel %vm129, %v670, 0
  %702 = vmatprep.subr.mxu0 0.0
  %703 = vmatpush1.msra.mxu0 %v681
  %704 = vmatprep.subr.mxu0 0.0
  %705 = vmatpush1.msra.mxu0 %v683
  %706 = vmatprep.subr.mxu0 0.0
  %707 = vmatpush1.msra.mxu0 %v685
  %708 = vmatprep.subr.mxu0 0.0
  %709 = vmatpush1.msra.mxu0 %v687
  %710 = vmatprep.subr.mxu0 0.0
  %711 = vmatpush1.msra.mxu0 0.0
  %712 = vmatprep.subr.mxu0 0.0
  %713 = vmatpush1.msra.mxu0 0.0
  %714 = vmatprep.subr.mxu0 0.0
  %715 = vmatpush1.msra.mxu0 0.0
  %716 = vmatprep.subr.mxu0 0.0
  %717 = vmatpush1.msra.mxu0 0.0
  %718 = vmatprep.subr.mxu0 0.0
  %719 = vmatpush1.msra.mxu0 0.0
  %720 = vmatprep.subr.mxu0 0.0
  %721 = vmatpush1.msra.mxu0 0.0
  %722 = vmatprep.subr.mxu0 0.0
  %723 = vmatpush1.msra.mxu0 0.0
  %724 = vmatprep.subr.mxu0 0.0
  %725 = vmatpush1.msra.mxu0 0.0
  %726 = vmatprep.subr.mxu0 0.0
  %727 = vmatpush1.msra.mxu0 0.0
  %728 = vmatprep.subr.mxu0 0.0
  %729 = vmatpush1.msra.mxu0 0.0
  %730 = vmatprep.subr.mxu0 0.0
  %731 = vmatpush1.msra.mxu0 0.0
  %732 = vmatprep.subr.mxu0 0.0
  %733 = vmatpush1.msra.mxu0 0.0
  %734 = vmatprep.subr.mxu0 0.0
  %735 = vmatpush1.msra.mxu0 0.0
  %736 = vmatprep.subr.mxu0 0.0
  %737 = vmatpush1.msra.mxu0 0.0
  %738 = vmatprep.subr.mxu0 0.0
  %739 = vmatpush1.msra.mxu0 0.0
  %740 = vmatprep.subr.mxu0 0.0
  %741 = vmatpush1.msra.mxu0 0.0
  %742 = vmatprep.subr.mxu0 0.0
  %743 = vmatpush1.msra.mxu0 0.0
  %744 = vmatprep.subr.mxu0 0.0
  %745 = vmatpush1.msra.mxu0 0.0
  %746 = vmatprep.subr.mxu0 0.0
  %747 = vmatpush1.msra.mxu0 0.0
  %748 = vmatprep.subr.mxu0 0.0
  %749 = vmatpush1.msra.mxu0 0.0
  %750 = vmatprep.subr.mxu0 0.0
  %751 = vmatpush1.msra.mxu0 0.0
  %752 = vmatprep.subr.mxu0 0.0
  %753 = vmatpush1.msra.mxu0 0.0
  %754 = vmatprep.subr.mxu0 0.0
  %755 = vmatpush1.msra.mxu0 0.0
  %756 = vmatprep.subr.mxu0 0.0
  %757 = vmatpush1.msra.mxu0 0.0
  %758 = vmatprep.subr.mxu0 0.0
  %759 = vmatpush1.msra.mxu0 0.0
  %760 = vmatprep.subr.mxu0 0.0
  %761 = vmatpush1.msra.mxu0 0.0
  %762 = vmatprep.subr.mxu0 0.0
  %763 = vmatpush1.msra.mxu0 0.0
  %764 = vmatprep.subr.mxu0 0.0
  %765 = vmatpush1.msra.mxu0 0.0
  %766 = vmatprep.mubr.f32.mxu0 0.0
  %767 = vmatmul.mubr.f32.gmra.mrb[0].mxu0 %v697
  %v768 = vpop.f32.mrb[0].mxu0
  %v769 = vadd.f32 %v694, %v768
  %v770 = vpop.f32.mrb[0].mxu0
  %771 = vmatprep.mubr.f32.mxu0 0.0
  %772 = vmatmul.mubr.f32.gmra.mrb[0].mxu0 %v700
  %v773 = vpop.f32.mrb[0].mxu0
  %v774 = vadd.f32 %v694, %v773
  %v775 = vpop.f32.mrb[0].mxu0
  %776 = vdwg.mxu0
  %v777 = vmul.f32 %v769, 0.5
  %v778 = vmul.f32 %v774, 0.5
  %v779 = vrcp.pop 1.4142135
  %v780 = vmul.f32 %v769, %v779
  %v781 = vmul.f32 %v774, %v779
  %v782 = verf.f32.pop %v780
  %v783 = verf.f32.pop %v781
  %v784 = vadd.f32 %v782, 1.0
  %v785 = vadd.f32 %v783, 1.0
  %v786 = vmul.f32 %v777, %v784
  %v787 = vmul.f32 %v778, %v785
  %788 = vrot.lane.b32.xlu0 %v116, 32
  %v789 = vpop.permute.xlu0 %788
  %790 = vrot.lane.b32.xlu0 %v117, 32
  %v791 = vpop.permute.xlu0 %790
  %792 = vrot.lane.b32.xlu0 %v118, 32
  %v793 = vpop.permute.xlu0 %792
  %794 = vrot.lane.b32.xlu0 %v119, 32
  %v795 = vpop.permute.xlu0 %794
  %v801 = vsel %vm129, %v786, 0
  %v804 = vsel %vm129, %v787, 0
  %806 = vmatprep.subr.mxu0 0.0
  %807 = vmatpush1.msra.mxu0 %v789
  %808 = vmatprep.subr.mxu0 0.0
  %809 = vmatpush1.msra.mxu0 %v791
  %810 = vmatprep.subr.mxu0 0.0
  %811 = vmatpush1.msra.mxu0 %v793
  %812 = vmatprep.subr.mxu0 0.0
  %813 = vmatpush1.msra.mxu0 %v795
  %814 = vmatprep.subr.mxu0 0.0
  %815 = vmatpush1.msra.mxu0 0.0
  %816 = vmatprep.subr.mxu0 0.0
  %817 = vmatpush1.msra.mxu0 0.0
  %818 = vmatprep.subr.mxu0 0.0
  %819 = vmatpush1.msra.mxu0 0.0
  %820 = vmatprep.subr.mxu0 0.0
  %821 = vmatpush1.msra.mxu0 0.0
  %822 = vmatprep.subr.mxu0 0.0
  %823 = vmatpush1.msra.mxu0 0.0
  %824 = vmatprep.subr.mxu0 0.0
  %825 = vmatpush1.msra.mxu0 0.0
  %826 = vmatprep.subr.mxu0 0.0
  %827 = vmatpush1.msra.mxu0 0.0
  %828 = vmatprep.subr.mxu0 0.0
  %829 = vmatpush1.msra.mxu0 0.0
  %830 = vmatprep.subr.mxu0 0.0
  %831 = vmatpush1.msra.mxu0 0.0
  %832 = vmatprep.subr.mxu0 0.0
  %833 = vmatpush1.msra.mxu0 0.0
  %834 = vmatprep.subr.mxu0 0.0
  %835 = vmatpush1.msra.mxu0 0.0
  %836 = vmatprep.subr.mxu0 0.0
  %837 = vmatpush1.msra.mxu0 0.0
  %838 = vmatprep.subr.mxu0 0.0
  %839 = vmatpush1.msra.mxu0 0.0
  %840 = vmatprep.subr.mxu0 0.0
  %841 = vmatpush1.msra.mxu0 0.0
  %842 = vmatprep.subr.mxu0 0.0
  %843 = vmatpush1.msra.mxu0 0.0
  %844 = vmatprep.subr.mxu0 0.0
  %845 = vmatpush1.msra.mxu0 0.0
  %846 = vmatprep.subr.mxu0 0.0
  %847 = vmatpush1.msra.mxu0 0.0
  %848 = vmatprep.subr.mxu0 0.0
  %849 = vmatpush1.msra.mxu0 0.0
  %850 = vmatprep.subr.mxu0 0.0
  %851 = vmatpush1.msra.mxu0 0.0
  %852 = vmatprep.subr.mxu0 0.0
  %853 = vmatpush1.msra.mxu0 0.0
  %854 = vmatprep.subr.mxu0 0.0
  %855 = vmatpush1.msra.mxu0 0.0
  %856 = vmatprep.subr.mxu0 0.0
  %857 = vmatpush1.msra.mxu0 0.0
  %858 = vmatprep.subr.mxu0 0.0
  %859 = vmatpush1.msra.mxu0 0.0
  %860 = vmatprep.subr.mxu0 0.0
  %861 = vmatpush1.msra.mxu0 0.0
  %862 = vmatprep.subr.mxu0 0.0
  %863 = vmatpush1.msra.mxu0 0.0
  %864 = vmatprep.subr.mxu0 0.0
  %865 = vmatpush1.msra.mxu0 0.0
  %866 = vmatprep.subr.mxu0 0.0
  %867 = vmatpush1.msra.mxu0 0.0
  %868 = vmatprep.subr.mxu0 0.0
  %869 = vmatpush1.msra.mxu0 0.0
  %870 = vmatprep.mubr.f32.mxu0 0.0
  %871 = vmatmul.mubr.f32.gmra.mrb[0].mxu0 %v801
  %v872 = vpop.f32.mrb[0].mxu0
  %v873 = vadd.f32 0.0, %v872
  %v874 = vpop.f32.mrb[0].mxu0
  %875 = vmatprep.mubr.f32.mxu0 0.0
  %876 = vmatmul.mubr.f32.gmra.mrb[0].mxu0 %v804
  %v877 = vpop.f32.mrb[0].mxu0
  %v878 = vadd.f32 0.0, %v877
  %v879 = vpop.f32.mrb[0].mxu0
  %880 = vdwg.mxu0
  %881 = vrot.lane.b32.xlu0 %v118, 16
  %v882 = vpop.permute.xlu0 %881
  %883 = vrot.lane.b32.xlu0 %v119, 16
  %v884 = vpop.permute.xlu0 %883
  %v887 = vmul.f32 %v873, %v882
  %v888 = vmul.f32 %v878, %v884
  %vm889 = vcmask 64512
  %890 = vst.msk [vmem:[#allocation2] sm:$0xff] %vm889, 0.0
  %891 = vst.msk [vmem:[#allocation2 + $0x18] sm:$0xff] %vm889, 0.0
  %892 = vst.msk [vmem:[#allocation2 + $0x8] sm:$0xff] %vm889, %v887
  %893 = vst.msk [vmem:[#allocation2 + $0x10] sm:$0xff] %vm889, %v888
  %v894 = vld [vmem:[#allocation2 + $0x5] sm:$0xff]
  %v895 = vld [vmem:[#allocation2 + $0xd] sm:$0xff]
  %v896 = vld [vmem:[#allocation2 + $0x6] sm:$0xff]
  %v897 = vld [vmem:[#allocation2 + $0xe] sm:$0xff]
  %900 = vrot.lane.b32.xlu0 %v896, 127
  %v901 = vpop.permute.xlu0 %900
  %902 = vrot.lane.b32.xlu0 %v897, 127
  %v903 = vpop.permute.xlu0 %902
  %v906 = vadd.f32 %v894, %v901
  %v907 = vadd.f32 %v895, %v903
  %v908 = vld [vmem:[#allocation2 + $0x7] sm:$0xff]
  %v909 = vld [vmem:[#allocation2 + $0xf] sm:$0xff]
  %912 = vrot.lane.b32.xlu0 %v908, 126
  %v913 = vpop.permute.xlu0 %912
  %914 = vrot.lane.b32.xlu0 %v909, 126
  %v915 = vpop.permute.xlu0 %914
  %v918 = vadd.f32 %v906, %v913
  %v919 = vadd.f32 %v907, %v915
  %v920 = vld [vmem:[#allocation2 + $0x8] sm:$0xff]
  %v921 = vld [vmem:[#allocation2 + $0x10] sm:$0xff]
  %924 = vrot.lane.b32.xlu0 %v920, 125
  %v925 = vpop.permute.xlu0 %924
  %926 = vrot.lane.b32.xlu0 %v921, 125
  %v927 = vpop.permute.xlu0 %926
  %v930 = vadd.f32 %v918, %v925
  %v931 = vadd.f32 %v919, %v927
  %v932 = vld [vmem:[#allocation2 + $0x9] sm:$0xff]
  %v933 = vld [vmem:[#allocation2 + $0x11] sm:$0xff]
  %936 = vrot.lane.b32.xlu0 %v932, 124
  %v937 = vpop.permute.xlu0 %936
  %938 = vrot.lane.b32.xlu0 %v933, 124
  %v939 = vpop.permute.xlu0 %938
  %v942 = vadd.f32 %v930, %v937
  %v943 = vadd.f32 %v931, %v939
  %v944 = vld [vmem:[#allocation2 + $0xa] sm:$0xff]
  %v945 = vld [vmem:[#allocation2 + $0x12] sm:$0xff]
  %948 = vrot.lane.b32.xlu0 %v944, 123
  %v949 = vpop.permute.xlu0 %948
  %950 = vrot.lane.b32.xlu0 %v945, 123
  %v951 = vpop.permute.xlu0 %950
  %v954 = vadd.f32 %v942, %v949
  %v955 = vadd.f32 %v943, %v951
  %v956 = vld [vmem:[#allocation2 + $0xb] sm:$0xff]
  %v957 = vld [vmem:[#allocation2 + $0x13] sm:$0xff]
  %960 = vrot.lane.b32.xlu0 %v956, 122
  %v961 = vpop.permute.xlu0 %960
  %962 = vrot.lane.b32.xlu0 %v957, 122
  %v963 = vpop.permute.xlu0 %962
  %v966 = vadd.f32 %v954, %v961
  %v967 = vadd.f32 %v955, %v963
  %v968 = vld [vmem:[%s1 + $0x10] sm:$0xff]
  %v969 = vld [vmem:[%s1 + $0x18] sm:$0xff]
  %972 = vrot.lane.b32.xlu0 %v968, 8
  %v973 = vpop.permute.xlu0 %972
  %974 = vrot.lane.b32.xlu0 %v969, 8
  %v975 = vpop.permute.xlu0 %974
  %v978 = vadd.f32 %v966, %v973
  %v979 = vadd.f32 %v967, %v975
  %v980 = vxor.u32 %v978, 2147483648
  %v981 = vxor.u32 %v979, 2147483648
  %v982 = vmul.f32 %v980, 1.442695
  %v983 = vpow.pop %v982
  %v984 = vmul.f32 %v981, 1.442695
  %v985 = vpow.pop %v984
  %v986 = vadd.f32 %v983, 1.0
  %v987 = vadd.f32 %v985, 1.0
  %v988 = vrcp.pop %v986
  %v989 = vmul.f32 1.0, %v988
  %v990 = vrcp.pop %v987
  %v991 = vmul.f32 1.0, %v990
  %vm992 = vcmask 7168
  %993 = vst.msk [vmem:[%s2] sm:$0xff] %vm992, %v989
  %994 = vst.msk [vmem:[%s2 + $0x8] sm:$0xff] %vm992, %v991
  // Predicated region
  $region10: #{network_forward.1} parent=0 // pred_check
    _
  $region11: #{network_forward.1} parent=0 // pred_check_branch
    %996 = sbr.rel (0) target = $region13
  $region12: #{network_forward.1} parent=0 // pred_region
    _
  $region13: #{network_forward.1} parent=0 // pred_fallthru
    _
  // Predicated region
  $region14: #{network_forward.1} parent=0 // pred_check
    _
  $region15: #{network_forward.1} parent=0 // pred_check_branch
    %998 = sbr.rel (0) target = $region17
  $region16: #{network_forward.1} parent=0 // pred_region
    _
  $region17: #{network_forward.1} parent=0 // pred_fallthru
    _

</llo_original>
